<compile_context>
chip_gen: v5e
topology: v5e:2x2
jax: 0.10.0
libtpu: 0.0.40
codegen_flags: <defaults>
</compile_context>

<pallas_src>
import jax
import jax.numpy as jnp
from jax.experimental import pallas as pl
from jax.experimental.pallas import tpu as pltpu


def _encoder_kernel(y_ref, w1_ref, b1_ref,
                    w2mu_ref, b2mu_ref, w2sg_ref, b2sg_ref,
                    mu_ref, sigma_ref):
    # First linear + ReLU  (MXU matmul, f32 accumulation)
    h = jnp.dot(y_ref[...], w1_ref[...], preferred_element_type=jnp.float32)
    h = h + b1_ref[...]                      # [TB, H] + [1, H] broadcast
    h = jnp.maximum(h, 0.0)                  # ReLU

    # mu head: produced directly, no lane slicing
    mu = jnp.dot(h, w2mu_ref[...], preferred_element_type=jnp.float32)
    mu = mu + b2mu_ref[...]                  # [TB, Z] + [1, Z]

    # sigma head: linear -> stable softplus -> + 1e-6
    pre = jnp.dot(h, w2sg_ref[...], preferred_element_type=jnp.float32)
    pre = pre + b2sg_ref[...]                # [TB, Z] + [1, Z]
    sp = jnp.maximum(pre, 0.0) + jnp.log1p(jnp.exp(-jnp.abs(pre)))
    sigma = 1e-6 + sp

    mu_ref[...] = mu.astype(mu_ref.dtype)
    sigma_ref[...] = sigma.astype(sigma_ref.dtype)


def encoder_forward(Y, w1, b1, w2, b2, z_dim, *, block_batch=None):
    """Y: [B, data_dim]; w1: [data_dim, hidden]; b1: [hidden];
       w2: [hidden, 2*z_dim]; b2: [2*z_dim]. Returns (mu, sigma), each [B, z_dim]."""
    B, data_dim = Y.shape
    hidden_dim = w1.shape[1]
    two_z = w2.shape[1]
    assert two_z == 2 * z_dim

    # Batch tile: as large as practical (VMEM is tiny at these model dims).
    if block_batch is None:
        block_batch = 1024
    tb = min(block_batch, B)
    if tb < B:
        # Keep sublane alignment (second-to-last block dim multiple of 8).
        tb = max(8, (tb // 8) * 8)
    grid = (pl.cdiv(B, tb),)

    # Split the second Linear into mu / sigma heads in the wrapper (free) so
    # the kernel never slices along the lane axis.
    w2_mu = w2[:, :z_dim]
    w2_sg = w2[:, z_dim:two_z]
    b2_mu = b2[:z_dim].reshape(1, z_dim)
    b2_sg = b2[z_dim:two_z].reshape(1, z_dim)
    b1_2d = b1.reshape(1, hidden_dim)

    itemsize = jnp.dtype(Y.dtype).itemsize
    cost = pl.CostEstimate(
        flops=2 * B * (data_dim * hidden_dim + hidden_dim * two_z),
        transcendentals=2 * B * z_dim,  # exp + log1p in softplus
        bytes_accessed=(B * data_dim + data_dim * hidden_dim + hidden_dim
                        + hidden_dim * two_z + two_z + 2 * B * z_dim) * itemsize,
    )

    mu, sigma = pl.pallas_call(
        _encoder_kernel,
        out_shape=(
            jax.ShapeDtypeStruct((B, z_dim), Y.dtype),
            jax.ShapeDtypeStruct((B, z_dim), Y.dtype),
        ),
        grid=grid,
        in_specs=[
            # Batch-streamed activation tile.
            pl.BlockSpec((tb, data_dim), lambda i: (i, 0)),
            # Weights / biases: constant block index -> stay resident in VMEM.
            pl.BlockSpec((data_dim, hidden_dim), lambda i: (0, 0)),
            pl.BlockSpec((1, hidden_dim), lambda i: (0, 0)),
            pl.BlockSpec((hidden_dim, z_dim), lambda i: (0, 0)),
            pl.BlockSpec((1, z_dim), lambda i: (0, 0)),
            pl.BlockSpec((hidden_dim, z_dim), lambda i: (0, 0)),
            pl.BlockSpec((1, z_dim), lambda i: (0, 0)),
        ],
        out_specs=(
            pl.BlockSpec((tb, z_dim), lambda i: (i, 0)),
            pl.BlockSpec((tb, z_dim), lambda i: (i, 0)),
        ),
        compiler_params=pltpu.CompilerParams(
            dimension_semantics=("parallel",),      # shard batch across TCs on v7x
            vmem_limit_bytes=32 * 1024 * 1024,      # explicit scoped cap, safe on v5e/v6e/v7x
        ),
        cost_estimate=cost,
    )(Y, w1, b1_2d, w2_mu, b2_mu, w2_sg, b2_sg)
    return mu, sigma


def _reference_forward(Y, w1, b1, w2, b2, z_dim):
    h = jnp.maximum(Y @ w1 + b1, 0.0)
    out = h @ w2 + b2
    mu = out[:, :z_dim]
    sigma = 1e-6 + jax.nn.softplus(out[:, z_dim:2 * z_dim])
    return mu, sigma


if __name__ == "__main__":
    # Small shapes consistent with the module: data_dim=16, hidden=32, z=8.
    # batch=64 with block_batch=16 exercises a multi-step (pipelined) grid.
    batch, data_dim, hidden_dim, z_dim = 64, 16, 32, 8

    key = jax.random.PRNGKey(0)
    k_y, k_w1, k_b1, k_w2, k_b2 = jax.random.split(key, 5)

    Y = jax.random.normal(k_y, (batch, data_dim), dtype=jnp.float32)
    # Deterministic "Linear"-style init (scaled normal), stored as [in, out].
    w1 = jax.random.normal(k_w1, (data_dim, hidden_dim), jnp.float32) * (1.0 / data_dim ** 0.5)
    b1 = jax.random.normal(k_b1, (hidden_dim,), jnp.float32) * 0.01
    w2 = jax.random.normal(k_w2, (hidden_dim, 2 * z_dim), jnp.float32) * (1.0 / hidden_dim ** 0.5)
    b2 = jax.random.normal(k_b2, (2 * z_dim,), jnp.float32) * 0.01

    mu, sigma = encoder_forward(Y, w1, b1, w2, b2, z_dim, block_batch=16)
    jax.block_until_ready((mu, sigma))

    mu_ref, sigma_ref = _reference_forward(Y, w1, b1, w2, b2, z_dim)
    assert mu.shape == (batch, z_dim) and sigma.shape == (batch, z_dim)
    assert jnp.allclose(mu, mu_ref, atol=1e-5, rtol=1e-5)
    assert jnp.allclose(sigma, sigma_ref, atol=1e-5, rtol=1e-5)
    assert bool(jnp.all(sigma > 0))

    print("KERNEL_OK")
</pallas_src>

<mosaic_0001>
module attributes {stable_mosaic.version = 11 : i64} {
  func.func @_encoder_kernel(%arg0: i32, %arg1: memref<16x16xf32, #tpu.memory_space<vmem>>, %arg2: memref<16x32xf32, #tpu.memory_space<vmem>>, %arg3: memref<1x32xf32, #tpu.memory_space<vmem>>, %arg4: memref<32x8xf32, #tpu.memory_space<vmem>>, %arg5: memref<1x8xf32, #tpu.memory_space<vmem>>, %arg6: memref<32x8xf32, #tpu.memory_space<vmem>>, %arg7: memref<1x8xf32, #tpu.memory_space<vmem>>, %arg8: memref<16x8xf32, #tpu.memory_space<vmem>>, %arg9: memref<16x8xf32, #tpu.memory_space<vmem>>) attributes {dimension_semantics = [#tpu.dimension_semantics<parallel>], iteration_bounds = array<i64: 4>, scalar_prefetch = 0 : i64, scratch_operands = 0 : i64, tpu.core_type = #tpu.core_type<tc>, window_params = [{transform_indices = @transform_0, window_bounds = array<i64: 16, 16>}, {pipeline_mode = #tpu.pipeline_mode<synchronous>, transform_indices = @transform_1, window_bounds = array<i64: 16, 32>}, {pipeline_mode = #tpu.pipeline_mode<synchronous>, transform_indices = @transform_2, window_bounds = array<i64: 1, 32>}, {pipeline_mode = #tpu.pipeline_mode<synchronous>, transform_indices = @transform_3, window_bounds = array<i64: 32, 8>}, {pipeline_mode = #tpu.pipeline_mode<synchronous>, transform_indices = @transform_4, window_bounds = array<i64: 1, 8>}, {pipeline_mode = #tpu.pipeline_mode<synchronous>, transform_indices = @transform_5, window_bounds = array<i64: 32, 8>}, {pipeline_mode = #tpu.pipeline_mode<synchronous>, transform_indices = @transform_6, window_bounds = array<i64: 1, 8>}, {transform_indices = @transform_7, window_bounds = array<i64: 16, 8>}, {transform_indices = @transform_8, window_bounds = array<i64: 16, 8>}]} {
    %c0 = arith.constant 0 : index
    %c0_0 = arith.constant 0 : index
    %0 = vector.load %arg1[%c0, %c0_0] : memref<16x16xf32, #tpu.memory_space<vmem>>, vector<16x16xf32>
    %c0_1 = arith.constant 0 : index
    %c0_2 = arith.constant 0 : index
    %1 = vector.load %arg2[%c0_1, %c0_2] : memref<16x32xf32, #tpu.memory_space<vmem>>, vector<16x32xf32>
    %cst = arith.constant dense<0.000000e+00> : vector<16x32xf32>
    %2 = tpu.matmul %0, %1, %cst {dimension_numbers = #tpu.dot_dimension_numbers<[1], [0], [0], [1], [0, 0, 1, 1], [], []>} : vector<16x16xf32>, vector<16x32xf32>, vector<16x32xf32> -> vector<16x32xf32>
    %c0_3 = arith.constant 0 : index
    %c0_4 = arith.constant 0 : index
    %3 = vector.load %arg3[%c0_3, %c0_4] : memref<1x32xf32, #tpu.memory_space<vmem>>, vector<1x32xf32>
    %4 = vector.broadcast %3 : vector<1x32xf32> to vector<16x32xf32>
    %5 = arith.addf %2, %4 : vector<16x32xf32>
    %cst_5 = arith.constant 0.000000e+00 : f32
    %6 = vector.broadcast %cst_5 : f32 to vector<16x32xf32>
    %7 = arith.maximumf %5, %6 : vector<16x32xf32>
    %c0_6 = arith.constant 0 : index
    %c0_7 = arith.constant 0 : index
    %8 = vector.load %arg4[%c0_6, %c0_7] : memref<32x8xf32, #tpu.memory_space<vmem>>, vector<32x8xf32>
    %cst_8 = arith.constant dense<0.000000e+00> : vector<16x8xf32>
    %9 = tpu.matmul %7, %8, %cst_8 {dimension_numbers = #tpu.dot_dimension_numbers<[1], [0], [0], [1], [0, 0, 1, 1], [], []>} : vector<16x32xf32>, vector<32x8xf32>, vector<16x8xf32> -> vector<16x8xf32>
    %c0_9 = arith.constant 0 : index
    %c0_10 = arith.constant 0 : index
    %10 = vector.load %arg5[%c0_9, %c0_10] : memref<1x8xf32, #tpu.memory_space<vmem>>, vector<1x8xf32>
    %11 = vector.broadcast %10 : vector<1x8xf32> to vector<16x8xf32>
    %12 = arith.addf %9, %11 : vector<16x8xf32>
    %c0_11 = arith.constant 0 : index
    %c0_12 = arith.constant 0 : index
    %13 = vector.load %arg6[%c0_11, %c0_12] : memref<32x8xf32, #tpu.memory_space<vmem>>, vector<32x8xf32>
    %cst_13 = arith.constant dense<0.000000e+00> : vector<16x8xf32>
    %14 = tpu.matmul %7, %13, %cst_13 {dimension_numbers = #tpu.dot_dimension_numbers<[1], [0], [0], [1], [0, 0, 1, 1], [], []>} : vector<16x32xf32>, vector<32x8xf32>, vector<16x8xf32> -> vector<16x8xf32>
    %c0_14 = arith.constant 0 : index
    %c0_15 = arith.constant 0 : index
    %15 = vector.load %arg7[%c0_14, %c0_15] : memref<1x8xf32, #tpu.memory_space<vmem>>, vector<1x8xf32>
    %16 = vector.broadcast %15 : vector<1x8xf32> to vector<16x8xf32>
    %17 = arith.addf %14, %16 : vector<16x8xf32>
    %cst_16 = arith.constant 0.000000e+00 : f32
    %18 = vector.broadcast %cst_16 : f32 to vector<16x8xf32>
    %19 = arith.maximumf %17, %18 : vector<16x8xf32>
    %20 = math.absf %17 : vector<16x8xf32>
    %cst_17 = arith.constant 0.000000e+00 : f32
    %21 = vector.broadcast %cst_17 : f32 to vector<16x8xf32>
    %22 = arith.subf %21, %20 : vector<16x8xf32>
    %23 = math.exp %22 : vector<16x8xf32>
    %24 = math.log1p %23 : vector<16x8xf32>
    %25 = arith.addf %19, %24 : vector<16x8xf32>
    %cst_18 = arith.constant 9.99999997E-7 : f32
    %26 = vector.broadcast %cst_18 : f32 to vector<16x8xf32>
    %27 = arith.addf %26, %25 : vector<16x8xf32>
    %c0_19 = arith.constant 0 : index
    %c0_20 = arith.constant 0 : index
    %28 = vector.load %arg8[%c0_19, %c0_20] : memref<16x8xf32, #tpu.memory_space<vmem>>, vector<16x8xf32>
    tpu.vector_store %arg8[%c0_19, %c0_20], %12 {strides = array<i32>} : memref<16x8xf32, #tpu.memory_space<vmem>>, vector<16x8xf32>,
    %c0_21 = arith.constant 0 : index
    %c0_22 = arith.constant 0 : index
    %29 = vector.load %arg9[%c0_21, %c0_22] : memref<16x8xf32, #tpu.memory_space<vmem>>, vector<16x8xf32>
    tpu.vector_store %arg9[%c0_21, %c0_22], %27 {strides = array<i32>} : memref<16x8xf32, #tpu.memory_space<vmem>>, vector<16x8xf32>,
    return
  }
  func.func @transform_0(%arg0: i32) -> (i32, i32) {
    %c0_i32 = arith.constant 0 : i32
    %c0_i32_0 = arith.constant 0 : i32
    return %arg0, %c0_i32 : i32, i32
  }
  func.func @transform_1(%arg0: i32) -> (i32, i32) {
    %c0_i32 = arith.constant 0 : i32
    %c0_i32_0 = arith.constant 0 : i32
    %c0_i32_1 = arith.constant 0 : i32
    return %c0_i32, %c0_i32_0 : i32, i32
  }
  func.func @transform_2(%arg0: i32) -> (i32, i32) {
    %c0_i32 = arith.constant 0 : i32
    %c0_i32_0 = arith.constant 0 : i32
    %c0_i32_1 = arith.constant 0 : i32
    return %c0_i32, %c0_i32_0 : i32, i32
  }
  func.func @transform_3(%arg0: i32) -> (i32, i32) {
    %c0_i32 = arith.constant 0 : i32
    %c0_i32_0 = arith.constant 0 : i32
    %c0_i32_1 = arith.constant 0 : i32
    return %c0_i32, %c0_i32_0 : i32, i32
  }
  func.func @transform_4(%arg0: i32) -> (i32, i32) {
    %c0_i32 = arith.constant 0 : i32
    %c0_i32_0 = arith.constant 0 : i32
    %c0_i32_1 = arith.constant 0 : i32
    return %c0_i32, %c0_i32_0 : i32, i32
  }
  func.func @transform_5(%arg0: i32) -> (i32, i32) {
    %c0_i32 = arith.constant 0 : i32
    %c0_i32_0 = arith.constant 0 : i32
    %c0_i32_1 = arith.constant 0 : i32
    return %c0_i32, %c0_i32_0 : i32, i32
  }
  func.func @transform_6(%arg0: i32) -> (i32, i32) {
    %c0_i32 = arith.constant 0 : i32
    %c0_i32_0 = arith.constant 0 : i32
    %c0_i32_1 = arith.constant 0 : i32
    return %c0_i32, %c0_i32_0 : i32, i32
  }
  func.func @transform_7(%arg0: i32) -> (i32, i32) {
    %c0_i32 = arith.constant 0 : i32
    %c0_i32_0 = arith.constant 0 : i32
    return %arg0, %c0_i32 : i32, i32
  }
  func.func @transform_8(%arg0: i32) -> (i32, i32) {
    %c0_i32 = arith.constant 0 : i32
    %c0_i32_0 = arith.constant 0 : i32
    return %arg0, %c0_i32 : i32, i32
  }
}

</mosaic_0001>

<llo_original>
// kernel: tpu_custom_call.1
$region0: #{tpu_custom_call.1}
  #allocation0 [shape = 'u32[]', space=smem, size = 0x4, offset = 0x4, fixed_abs, tag = 'smem constant byte address 0x4 - core index']
  #allocation1 [shape = 'u32[72,128]{1,0:T(1,128)}', space=vmem, size = 0x9000, scoped, tag = 'internal scratch']
  %s0 = inlined_call_operand.vmem [shape: f32[64,16], index: 0, kind: input, shape index: {}]
  %s1 = inlined_call_operand.vmem [shape: f32[16,32], index: 1, kind: input, shape index: {}]
  %s2 = inlined_call_operand.vmem [shape: f32[1,32], index: 2, kind: input, shape index: {}]
  %s3 = inlined_call_operand.vmem [shape: f32[32,8], index: 3, kind: input, shape index: {}]
  %s4 = inlined_call_operand.vmem [shape: f32[1,8], index: 4, kind: input, shape index: {}]
  %s5 = inlined_call_operand.vmem [shape: f32[32,8], index: 5, kind: input, shape index: {}]
  %s6 = inlined_call_operand.vmem [shape: f32[1,8], index: 6, kind: input, shape index: {}]
  %s7 = inlined_call_operand.vmem [shape: f32[64,8], index: 7, kind: output, shape index: {0}]
  %s8 = inlined_call_operand.vmem [shape: f32[64,8], index: 8, kind: output, shape index: {1}]
  %9 = xla_tuple %s7, %s8
  %s10 = sld [smem:[#allocation0]]
  $region69: #{tpu_custom_call.1} parent=0
    _
  %s12 = ssub.s32 1, %s10
  %s13 = scalar_select 0, %s12, %s10
  loop: start=0, step=1, limit=6
  $region2: #{tpu_custom_call.1} parent=0 // loop_pre_header
    _
  $region3: #{tpu_custom_call.1} parent=0 // loop_header
    %s15 = sphi 0, %s19
    %p16 = scmp.ge.s32.totalorder %s15, 6
    %s25 = sphi 0, %s27
    %s28 = sphi 0, %s25
    %s29 = sphi 0, %s28
    %s45 = sphi 0, %s29
    %s49 = sphi 0, %s49
    %s51 = sphi 0, %s49
    %s52 = sphi 0, %s51
    %s66 = sphi 0, %s52
    %s70 = sphi 0, %s70
    %s72 = sphi 0, %s70
    %s73 = sphi 0, %s72
    %s87 = sphi 0, %s73
    %s91 = sphi 0, %s91
    %s93 = sphi 0, %s91
    %s94 = sphi 0, %s93
    %s108 = sphi 0, %s94
    %s112 = sphi 0, %s112
    %s114 = sphi 0, %s112
    %s115 = sphi 0, %s114
    %s129 = sphi 0, %s115
    %s133 = sphi 0, %s133
    %s135 = sphi 0, %s133
    %s136 = sphi 0, %s135
    %s150 = sphi 0, %s136
    %s154 = sphi 0, %s154
    %s156 = sphi 0, %s154
    %s157 = sphi 0, %s156
    %s171 = sphi 0, %s157
    %s177 = sphi 0, %s179
    %s180 = sphi 0, %s177
    %s181 = sphi 0, %s180
    %s197 = sphi 0, %s181
    %s203 = sphi 0, %s205
    %s206 = sphi 0, %s203
    %s207 = sphi 0, %s206
    %s223 = sphi 0, %s207
  $region4: #{tpu_custom_call.1} parent=0 // loop_header_branch
    %18 = sbr.rel (%p16) target = $region8
  $region5: #{tpu_custom_call.1} parent=0 // loop_body
    %s20 = ssub.s32 %s15, 1
    %s21 = ssub.s32 %s15, 2
    %s22 = sadd.s32 %s15, 1
    %s23 = ssub.s32 %s15, %s22
    %p24 = scmp.eq.s32.totalorder %s23, 0
    %s26 = sadd.s32 %s25, 1
    %s27 = scalar_select %p24, %s25, %s26
    %p30 = pneg %p24
    %p31 = scmp.eq.s32.totalorder %s15, 3
    %p32 = por %p30, %p31
    %p33 = scmp.ne.s32.totalorder %s25, %s28
    %p34 = scmp.eq.s32.totalorder %s15, 0
    %p35 = por %p33, %p34
    %p36 = scmp.ne.s32.totalorder %s25, %s28
    %p37 = scmp.eq.s32.totalorder %s20, 3
    %p38 = por %p36, %p37
    %p39 = scmp.ne.s32.totalorder %s28, %s29
    %p40 = scmp.eq.s32.totalorder %s20, 0
    %p41 = por %p39, %p40
    %p42 = scmp.ne.s32.totalorder %s28, %s29
    %p43 = scmp.eq.s32.totalorder %s21, 3
    %p44 = por %p42, %p43
    %p46 = scmp.ne.s32.totalorder %s29, %s45
    %p47 = scmp.eq.s32.totalorder %s21, 0
    %p48 = por %p46, %p47
    %s50 = sadd.s32 %s49, 1
    %p53 = scmp.eq.s32.totalorder %s15, 3
    %p54 = scmp.ne.s32.totalorder %s49, %s51
    %p55 = scmp.eq.s32.totalorder %s15, 0
    %p56 = por %p54, %p55
    %p57 = scmp.ne.s32.totalorder %s49, %s51
    %p58 = scmp.eq.s32.totalorder %s20, 3
    %p59 = por %p57, %p58
    %p60 = scmp.ne.s32.totalorder %s51, %s52
    %p61 = scmp.eq.s32.totalorder %s20, 0
    %p62 = por %p60, %p61
    %p63 = scmp.ne.s32.totalorder %s51, %s52
    %p64 = scmp.eq.s32.totalorder %s21, 3
    %p65 = por %p63, %p64
    %p67 = scmp.ne.s32.totalorder %s52, %s66
    %p68 = scmp.eq.s32.totalorder %s21, 0
    %p69 = por %p67, %p68
    %s71 = sadd.s32 %s70, 1
    %p74 = scmp.eq.s32.totalorder %s15, 3
    %p75 = scmp.ne.s32.totalorder %s70, %s72
    %p76 = scmp.eq.s32.totalorder %s15, 0
    %p77 = por %p75, %p76
    %p78 = scmp.ne.s32.totalorder %s70, %s72
    %p79 = scmp.eq.s32.totalorder %s20, 3
    %p80 = por %p78, %p79
    %p81 = scmp.ne.s32.totalorder %s72, %s73
    %p82 = scmp.eq.s32.totalorder %s20, 0
    %p83 = por %p81, %p82
    %p84 = scmp.ne.s32.totalorder %s72, %s73
    %p85 = scmp.eq.s32.totalorder %s21, 3
    %p86 = por %p84, %p85
    %p88 = scmp.ne.s32.totalorder %s73, %s87
    %p89 = scmp.eq.s32.totalorder %s21, 0
    %p90 = por %p88, %p89
    %s92 = sadd.s32 %s91, 1
    %p95 = scmp.eq.s32.totalorder %s15, 3
    %p96 = scmp.ne.s32.totalorder %s91, %s93
    %p97 = scmp.eq.s32.totalorder %s15, 0
    %p98 = por %p96, %p97
    %p99 = scmp.ne.s32.totalorder %s91, %s93
    %p100 = scmp.eq.s32.totalorder %s20, 3
    %p101 = por %p99, %p100
    %p102 = scmp.ne.s32.totalorder %s93, %s94
    %p103 = scmp.eq.s32.totalorder %s20, 0
    %p104 = por %p102, %p103
    %p105 = scmp.ne.s32.totalorder %s93, %s94
    %p106 = scmp.eq.s32.totalorder %s21, 3
    %p107 = por %p105, %p106
    %p109 = scmp.ne.s32.totalorder %s94, %s108
    %p110 = scmp.eq.s32.totalorder %s21, 0
    %p111 = por %p109, %p110
    %s113 = sadd.s32 %s112, 1
    %p116 = scmp.eq.s32.totalorder %s15, 3
    %p117 = scmp.ne.s32.totalorder %s112, %s114
    %p118 = scmp.eq.s32.totalorder %s15, 0
    %p119 = por %p117, %p118
    %p120 = scmp.ne.s32.totalorder %s112, %s114
    %p121 = scmp.eq.s32.totalorder %s20, 3
    %p122 = por %p120, %p121
    %p123 = scmp.ne.s32.totalorder %s114, %s115
    %p124 = scmp.eq.s32.totalorder %s20, 0
    %p125 = por %p123, %p124
    %p126 = scmp.ne.s32.totalorder %s114, %s115
    %p127 = scmp.eq.s32.totalorder %s21, 3
    %p128 = por %p126, %p127
    %p130 = scmp.ne.s32.totalorder %s115, %s129
    %p131 = scmp.eq.s32.totalorder %s21, 0
    %p132 = por %p130, %p131
    %s134 = sadd.s32 %s133, 1
    %p137 = scmp.eq.s32.totalorder %s15, 3
    %p138 = scmp.ne.s32.totalorder %s133, %s135
    %p139 = scmp.eq.s32.totalorder %s15, 0
    %p140 = por %p138, %p139
    %p141 = scmp.ne.s32.totalorder %s133, %s135
    %p142 = scmp.eq.s32.totalorder %s20, 3
    %p143 = por %p141, %p142
    %p144 = scmp.ne.s32.totalorder %s135, %s136
    %p145 = scmp.eq.s32.totalorder %s20, 0
    %p146 = por %p144, %p145
    %p147 = scmp.ne.s32.totalorder %s135, %s136
    %p148 = scmp.eq.s32.totalorder %s21, 3
    %p149 = por %p147, %p148
    %p151 = scmp.ne.s32.totalorder %s136, %s150
    %p152 = scmp.eq.s32.totalorder %s21, 0
    %p153 = por %p151, %p152
    %s155 = sadd.s32 %s154, 1
    %p158 = scmp.eq.s32.totalorder %s15, 3
    %p159 = scmp.ne.s32.totalorder %s154, %s156
    %p160 = scmp.eq.s32.totalorder %s15, 0
    %p161 = por %p159, %p160
    %p162 = scmp.ne.s32.totalorder %s154, %s156
    %p163 = scmp.eq.s32.totalorder %s20, 3
    %p164 = por %p162, %p163
    %p165 = scmp.ne.s32.totalorder %s156, %s157
    %p166 = scmp.eq.s32.totalorder %s20, 0
    %p167 = por %p165, %p166
    %p168 = scmp.ne.s32.totalorder %s156, %s157
    %p169 = scmp.eq.s32.totalorder %s21, 3
    %p170 = por %p168, %p169
    %p172 = scmp.ne.s32.totalorder %s157, %s171
    %p173 = scmp.eq.s32.totalorder %s21, 0
    %p174 = por %p172, %p173
    %s175 = ssub.s32 %s15, %s22
    %p176 = scmp.eq.s32.totalorder %s175, 0
    %s178 = sadd.s32 %s177, 1
    %s179 = scalar_select %p176, %s177, %s178
    %p182 = pneg %p176
    %p183 = scmp.eq.s32.totalorder %s15, 3
    %p184 = por %p182, %p183
    %p185 = scmp.ne.s32.totalorder %s177, %s180
    %p186 = scmp.eq.s32.totalorder %s15, 0
    %p187 = por %p185, %p186
    %p188 = scmp.ne.s32.totalorder %s177, %s180
    %p189 = scmp.eq.s32.totalorder %s20, 3
    %p190 = por %p188, %p189
    %p191 = scmp.ne.s32.totalorder %s180, %s181
    %p192 = scmp.eq.s32.totalorder %s20, 0
    %p193 = por %p191, %p192
    %p194 = scmp.ne.s32.totalorder %s180, %s181
    %p195 = scmp.eq.s32.totalorder %s21, 3
    %p196 = por %p194, %p195
    %p198 = scmp.ne.s32.totalorder %s181, %s197
    %p199 = scmp.eq.s32.totalorder %s21, 0
    %p200 = por %p198, %p199
    %s201 = ssub.s32 %s15, %s22
    %p202 = scmp.eq.s32.totalorder %s201, 0
    %s204 = sadd.s32 %s203, 1
    %s205 = scalar_select %p202, %s203, %s204
    %p208 = pneg %p202
    %p209 = scmp.eq.s32.totalorder %s15, 3
    %p210 = por %p208, %p209
    %p211 = scmp.ne.s32.totalorder %s203, %s206
    %p212 = scmp.eq.s32.totalorder %s15, 0
    %p213 = por %p211, %p212
    %p214 = scmp.ne.s32.totalorder %s203, %s206
    %p215 = scmp.eq.s32.totalorder %s20, 3
    %p216 = por %p214, %p215
    %p217 = scmp.ne.s32.totalorder %s206, %s207
    %p218 = scmp.eq.s32.totalorder %s20, 0
    %p219 = por %p217, %p218
    %p220 = scmp.ne.s32.totalorder %s206, %s207
    %p221 = scmp.eq.s32.totalorder %s21, 3
    %p222 = por %p220, %p221
    %p224 = scmp.ne.s32.totalorder %s207, %s223
    %p225 = scmp.eq.s32.totalorder %s21, 0
    %p226 = por %p224, %p225
    %p227 = scmp.le.s32.totalorder 1, %s15
    %p228 = scmp.lt.s32.totalorder %s15, 5
    %p229 = pnand %p227, %p228
    %p230 = pneg %p229
    // Predicated region
    $region9: #{tpu_custom_call.1} parent=5 // pred_check
      _
    $region10: #{tpu_custom_call.1} parent=5 // pred_check_branch
      %232 = sbr.rel (%p229) target = $region12
    $region11: #{tpu_custom_call.1} parent=5 // pred_region
      %s233 = ssub.s32 %s15, 1
      // Predicated region
      $region13: #{tpu_custom_call.1} parent=11 // pred_check
        %p234 = pneg %p62
      $region14: #{tpu_custom_call.1} parent=11 // pred_check_branch
        %236 = sbr.rel (%p234) target = $region16
      $region15: #{tpu_custom_call.1} parent=11 // pred_region
        _
      $region16: #{tpu_custom_call.1} parent=11 // pred_fallthru
        _
      // Predicated region
      $region17: #{tpu_custom_call.1} parent=11 // pred_check
        %p237 = pneg %p83
      $region18: #{tpu_custom_call.1} parent=11 // pred_check_branch
        %239 = sbr.rel (%p237) target = $region20
      $region19: #{tpu_custom_call.1} parent=11 // pred_region
        _
      $region20: #{tpu_custom_call.1} parent=11 // pred_fallthru
        _
      // Predicated region
      $region21: #{tpu_custom_call.1} parent=11 // pred_check
        %p240 = pneg %p104
      $region22: #{tpu_custom_call.1} parent=11 // pred_check_branch
        %242 = sbr.rel (%p240) target = $region24
      $region23: #{tpu_custom_call.1} parent=11 // pred_region
        _
      $region24: #{tpu_custom_call.1} parent=11 // pred_fallthru
        _
      // Predicated region
      $region25: #{tpu_custom_call.1} parent=11 // pred_check
        %p243 = pneg %p125
      $region26: #{tpu_custom_call.1} parent=11 // pred_check_branch
        %245 = sbr.rel (%p243) target = $region28
      $region27: #{tpu_custom_call.1} parent=11 // pred_region
        _
      $region28: #{tpu_custom_call.1} parent=11 // pred_fallthru
        _
      // Predicated region
      $region29: #{tpu_custom_call.1} parent=11 // pred_check
        %p246 = pneg %p146
      $region30: #{tpu_custom_call.1} parent=11 // pred_check_branch
        %248 = sbr.rel (%p246) target = $region32
      $region31: #{tpu_custom_call.1} parent=11 // pred_region
        _
      $region32: #{tpu_custom_call.1} parent=11 // pred_fallthru
        _
      // Predicated region
      $region33: #{tpu_custom_call.1} parent=11 // pred_check
        %p249 = pneg %p167
      $region34: #{tpu_custom_call.1} parent=11 // pred_check_branch
        %251 = sbr.rel (%p249) target = $region36
      $region35: #{tpu_custom_call.1} parent=11 // pred_region
        _
      $region36: #{tpu_custom_call.1} parent=11 // pred_fallthru
        _
    $region12: #{tpu_custom_call.1} parent=5 // pred_fallthru
      _
    %p252 = scmp.lt.s32.totalorder %s15, 4
    // Predicated region
    $region37: #{tpu_custom_call.1} parent=5 // pred_check
      %p253 = pneg %p252
    $region38: #{tpu_custom_call.1} parent=5 // pred_check_branch
      %255 = sbr.rel (%p253) target = $region40
    $region39: #{tpu_custom_call.1} parent=5 // pred_region
      // Predicated region
      $region41: #{tpu_custom_call.1} parent=39 // pred_check
        %p256 = pneg %p35
      $region42: #{tpu_custom_call.1} parent=39 // pred_check_branch
        %258 = sbr.rel (%p256) target = $region44
      $region43: #{tpu_custom_call.1} parent=39 // pred_region
        %s259 = smul.u32 2, %s15
        %p260 = scmp.lt.s32.totalorder %s259, 7
        %s261 = scalar_select %p260, %s259, 7
        %s262 = smul.addr %s261, 8
        %s263 = scalar_lea.vmem %s0, %s262
        %s264 = smul.u32 2, %s15
      $region44: #{tpu_custom_call.1} parent=39 // pred_fallthru
        _
    $region40: #{tpu_custom_call.1} parent=5 // pred_fallthru
      _
    %p265 = scmp.le.s32.totalorder 1, %s15
    %p266 = scmp.lt.s32.totalorder %s15, 5
    %p267 = pnand %p265, %p266
    %p268 = pneg %p267
    // Predicated region
    $region45: #{tpu_custom_call.1} parent=5 // pred_check
      _
    $region46: #{tpu_custom_call.1} parent=5 // pred_check_branch
      %270 = sbr.rel (%p267) target = $region48
    $region47: #{tpu_custom_call.1} parent=5 // pred_region
      %s271 = ssub.s32 %s15, 1
      %s272 = smul.u32 2, %s20
      %p273 = scmp.lt.s32.totalorder %s272, 7
      %s274 = scalar_select %p273, %s272, 7
      %s275 = smul.addr %s274, 8
      %s276 = scalar_lea.vmem %s0, %s275
      %p277 = pneg %p41
      %p278 = pneg %p38
      %p279 = pneg %p62
      %p280 = pneg %p59
      %p281 = pneg %p83
      %p282 = pneg %p80
      %p283 = pneg %p104
      %p284 = pneg %p101
      %p285 = pneg %p125
      %p286 = pneg %p122
      %p287 = pneg %p146
      %p288 = pneg %p143
      %p289 = pneg %p167
      %p290 = pneg %p164
      %p291 = pneg %p193
      %p292 = pneg %p190
      %s293 = smul.u32 2, %s20
      %p294 = scmp.lt.s32.totalorder %s293, 7
      %s295 = scalar_select %p294, %s293, 7
      %s296 = smul.addr %s295, 8
      %s297 = scalar_lea.vmem %s7, %s296
      %p298 = pneg %p219
      %p299 = pneg %p216
      %s300 = smul.u32 2, %s20
      %p301 = scmp.lt.s32.totalorder %s300, 7
      %s302 = scalar_select %p301, %s300, 7
      %s303 = smul.addr %s302, 8
      %s304 = scalar_lea.vmem %s8, %s303
      %s305 = smul.u32 2, %s20
      %p306 = scmp.lt.s32.totalorder %s305, 7
      %s307 = scalar_select %p306, %s305, 7
      %s308 = smul.addr %s307, 8
      %s309 = scalar_lea.vmem %s0, %s308
      %s310 = smul.u32 2, %s20
      %s311 = smul.u32 2, %s20
      %p312 = scmp.lt.s32.totalorder %s311, 7
      %s313 = scalar_select %p312, %s311, 7
      %s314 = smul.addr %s313, 8
      %s315 = scalar_lea.vmem %s7, %s314
      %s316 = smul.u32 2, %s20
      %s317 = smul.u32 2, %s20
      %p318 = scmp.lt.s32.totalorder %s317, 7
      %s319 = scalar_select %p318, %s317, 7
      %s320 = smul.addr %s319, 8
      %s321 = scalar_lea.vmem %s8, %s320
      %s322 = smul.u32 2, %s20
      %v323 = vld [vmem:[%s309] sm:$0xff]
      %v324 = vld [vmem:[%s309 + $0x8] sm:$0xff]
      %v325 = vld [vmem:[%s1] sm:$0xff]
      %v326 = vld [vmem:[%s1 + $0x8] sm:$0xff]
      %v327 = vld [vmem:[%s2] sm:$0x1]
      %v329 = vperm.slane %v327, 0
      %vm331 = vcmask 130048
      %v333 = vsel %vm331, %v323, 0
      %v336 = vsel %vm331, %v324, 0
      %338 = vmatpush.msra.mxu0 0.0
      %339 = vmatpush.msra.mxu0 0.0
      %340 = vmatpush.msra.mxu0 0.0
      %341 = vmatpush.msra.mxu0 0.0
      %342 = vmatpush.msra.mxu0 0.0
      %343 = vmatpush.msra.mxu0 0.0
      %344 = vmatpush.msra.mxu0 0.0
      %345 = vmatpush.msra.mxu0 0.0
      %346 = vmatpush.msra.mxu0 0.0
      %347 = vmatpush.msra.mxu0 0.0
      %348 = vmatpush.msra.mxu0 0.0
      %349 = vmatpush.msra.mxu0 0.0
      %350 = vmatpush.msra.mxu0 0.0
      %351 = vmatpush.msra.mxu0 0.0
      %352 = vmatpush.msra.mxu0 %v326
      %353 = vmatpush.msra.mxu0 %v325
      %354 = vmatmul.f32.gmra.mxu0 %v333
      %v355 = vpop.f32.mrf.mxu0
      %v356 = vadd.f32 %v329, %v355
      %357 = vmatmul.f32.gmra.mxu0 %v336
      %v358 = vpop.f32.mrf.mxu0
      %v359 = vadd.f32 %v329, %v358
      %360 = vdwg.mxu0
      %v361 = vmax.f32 %v356, 0.0
      %v362 = vmax.f32 %v359, 0.0
      %v363 = vld [vmem:[%s3] sm:$0xff]
      %v364 = vld [vmem:[%s3 + $0x8] sm:$0xff]
      %v365 = vld [vmem:[%s3 + $0x10] sm:$0xff]
      %v366 = vld [vmem:[%s3 + $0x18] sm:$0xff]
      %v367 = vld [vmem:[%s4] sm:$0x1]
      %v369 = vperm.slane %v367, 0
      %vm371 = vcmask 261120
      %v373 = vsel %vm371, %v361, 0
      %v376 = vsel %vm371, %v362, 0
      %378 = vmatpush.msra.mxu0 0.0
      %379 = vmatpush.msra.mxu0 0.0
      %380 = vmatpush.msra.mxu0 0.0
      %381 = vmatpush.msra.mxu0 0.0
      %382 = vmatpush.msra.mxu0 0.0
      %383 = vmatpush.msra.mxu0 0.0
      %384 = vmatpush.msra.mxu0 0.0
      %385 = vmatpush.msra.mxu0 0.0
      %386 = vmatpush.msra.mxu0 0.0
      %387 = vmatpush.msra.mxu0 0.0
      %388 = vmatpush.msra.mxu0 0.0
      %389 = vmatpush.msra.mxu0 0.0
      %390 = vmatpush.msra.mxu0 %v366
      %391 = vmatpush.msra.mxu0 %v365
      %392 = vmatpush.msra.mxu0 %v364
      %393 = vmatpush.msra.mxu0 %v363
      %394 = vmatmul.f32.gmra.mxu0 %v373
      %v395 = vpop.f32.mrf.mxu0
      %v396 = vadd.f32 %v369, %v395
      %397 = vmatmul.f32.gmra.mxu0 %v376
      %v398 = vpop.f32.mrf.mxu0
      %v399 = vadd.f32 %v369, %v398
      %400 = vdwg.mxu0
      %v401 = vld [vmem:[%s5] sm:$0xff]
      %v402 = vld [vmem:[%s5 + $0x8] sm:$0xff]
      %v403 = vld [vmem:[%s5 + $0x10] sm:$0xff]
      %v404 = vld [vmem:[%s5 + $0x18] sm:$0xff]
      %v405 = vld [vmem:[%s6] sm:$0x1]
      %v407 = vperm.slane %v405, 0
      %409 = vmatpush.msra.mxu0 0.0
      %410 = vmatpush.msra.mxu0 0.0
      %411 = vmatpush.msra.mxu0 0.0
      %412 = vmatpush.msra.mxu0 0.0
      %413 = vmatpush.msra.mxu0 0.0
      %414 = vmatpush.msra.mxu0 0.0
      %415 = vmatpush.msra.mxu0 0.0
      %416 = vmatpush.msra.mxu0 0.0
      %417 = vmatpush.msra.mxu0 0.0
      %418 = vmatpush.msra.mxu0 0.0
      %419 = vmatpush.msra.mxu0 0.0
      %420 = vmatpush.msra.mxu0 0.0
      %421 = vmatpush.msra.mxu0 %v404
      %422 = vmatpush.msra.mxu0 %v403
      %423 = vmatpush.msra.mxu0 %v402
      %424 = vmatpush.msra.mxu0 %v401
      %425 = vmatmul.f32.gmra.mxu0 %v373
      %v426 = vpop.f32.mrf.mxu0
      %v427 = vadd.f32 %v407, %v426
      %428 = vmatmul.f32.gmra.mxu0 %v376
      %v429 = vpop.f32.mrf.mxu0
      %v430 = vadd.f32 %v407, %v429
      %431 = vdwg.mxu0
      %v432 = vmax.f32 %v427, 0.0
      %v433 = vmax.f32 %v430, 0.0
      %v434 = vand.u32 2147483647, %v427
      %v435 = vand.u32 2147483647, %v430
      %v436 = vsub.f32 0.0, %v434
      %v437 = vsub.f32 0.0, %v435
      %v438 = vmul.f32 %v436, 1.442695
      %v439 = vpow.pop %v438
      %v440 = vmul.f32 %v437, 1.442695
      %v441 = vpow.pop %v440
      %v442 = vadd.f32 %v439, 1.0
      %v443 = vlog2.pop %v442
      %v444 = vmul.f32 %v443, 0.6931472
      %v445 = vmul.f32 -0.5, %v439
      %v446 = vadd.f32 %v445, 1.0
      %v447 = vmul.f32 %v446, %v439
      %v448 = vand.u32 2147483647, %v439
      %vm449 = vcmp.lt.f32.partialorder %v448, 0.0004427343
      %v450 = vsel %vm449, %v447, %v444
      %v451 = vadd.f32 %v441, 1.0
      %v452 = vlog2.pop %v451
      %v453 = vmul.f32 %v452, 0.6931472
      %v454 = vmul.f32 -0.5, %v441
      %v455 = vadd.f32 %v454, 1.0
      %v456 = vmul.f32 %v455, %v441
      %v457 = vand.u32 2147483647, %v441
      %vm458 = vcmp.lt.f32.partialorder %v457, 0.0004427343
      %v459 = vsel %vm458, %v456, %v453
      %v460 = vadd.f32 %v432, %v450
      %v461 = vadd.f32 %v433, %v459
      %v462 = vadd.f32 %v460, 1e-06
      %v463 = vadd.f32 %v461, 1e-06
      %vm464 = vcmask 64512
      %465 = vst.msk [vmem:[%s315] sm:$0xff] %vm464, %v396
      %466 = vst.msk [vmem:[%s315 + $0x8] sm:$0xff] %vm464, %v399
      %467 = vst.msk [vmem:[%s321] sm:$0xff] %vm464, %v462
      %468 = vst.msk [vmem:[%s321 + $0x8] sm:$0xff] %vm464, %v463
      %s469 = smul.u32 2, %s20
      %p470 = scmp.lt.s32.totalorder %s469, 7
      %s471 = scalar_select %p470, %s469, 7
      %s472 = smul.addr %s471, 8
      %s473 = scalar_lea.vmem %s7, %s472
      %s474 = smul.u32 2, %s20
      %p475 = scmp.lt.s32.totalorder %s474, 7
      %s476 = scalar_select %p475, %s474, 7
      %s477 = smul.addr %s476, 8
      %s478 = scalar_lea.vmem %s8, %s477
      // Predicated region
      $region49: #{tpu_custom_call.1} parent=47 // pred_check
        %p479 = pneg %p190
      $region50: #{tpu_custom_call.1} parent=47 // pred_check_branch
        %481 = sbr.rel (%p479) target = $region52
      $region51: #{tpu_custom_call.1} parent=47 // pred_region
        %s482 = smul.u32 2, %s20
      $region52: #{tpu_custom_call.1} parent=47 // pred_fallthru
        _
      // Predicated region
      $region53: #{tpu_custom_call.1} parent=47 // pred_check
        %p483 = pneg %p216
      $region54: #{tpu_custom_call.1} parent=47 // pred_check_branch
        %485 = sbr.rel (%p483) target = $region56
      $region55: #{tpu_custom_call.1} parent=47 // pred_region
        %s486 = smul.u32 2, %s20
      $region56: #{tpu_custom_call.1} parent=47 // pred_fallthru
        _
    $region48: #{tpu_custom_call.1} parent=5 // pred_fallthru
      _
    %p487 = scmp.le.s32.totalorder 2, %s15
    // Predicated region
    $region57: #{tpu_custom_call.1} parent=5 // pred_check
      %p488 = pneg %p487
    $region58: #{tpu_custom_call.1} parent=5 // pred_check_branch
      %490 = sbr.rel (%p488) target = $region60
    $region59: #{tpu_custom_call.1} parent=5 // pred_region
      %s491 = ssub.s32 %s15, 2
      // Predicated region
      $region61: #{tpu_custom_call.1} parent=59 // pred_check
        %p492 = pneg %p196
      $region62: #{tpu_custom_call.1} parent=59 // pred_check_branch
        %494 = sbr.rel (%p492) target = $region64
      $region63: #{tpu_custom_call.1} parent=59 // pred_region
        %s495 = smul.u32 2, %s21
        %p496 = scmp.lt.s32.totalorder %s495, 7
        %s497 = scalar_select %p496, %s495, 7
        %s498 = smul.addr %s497, 8
        %s499 = scalar_lea.vmem %s7, %s498
      $region64: #{tpu_custom_call.1} parent=59 // pred_fallthru
        _
      // Predicated region
      $region65: #{tpu_custom_call.1} parent=59 // pred_check
        %p500 = pneg %p222
      $region66: #{tpu_custom_call.1} parent=59 // pred_check_branch
        %502 = sbr.rel (%p500) target = $region68
      $region67: #{tpu_custom_call.1} parent=59 // pred_region
        %s503 = smul.u32 2, %s21
        %p504 = scmp.lt.s32.totalorder %s503, 7
        %s505 = scalar_select %p504, %s503, 7
        %s506 = smul.addr %s505, 8
        %s507 = scalar_lea.vmem %s8, %s506
      $region68: #{tpu_custom_call.1} parent=59 // pred_fallthru
        _
    $region60: #{tpu_custom_call.1} parent=5 // pred_fallthru
      _
  $region6: #{tpu_custom_call.1} parent=0 // loop_footer
    %s19 = sadd.s32 1, %s15
  $region7: #{tpu_custom_call.1} parent=0 // loop_footer_branch
    %14 = sbr.rel target = $region3
  $region8: #{tpu_custom_call.1} parent=0 // loop_exit
    _

</llo_original>
